<compile_context>
chip_gen: v6e
topology: v6e:2x2x1
jax: 0.10.0
libtpu: 0.0.40
codegen_flags: <defaults>
</compile_context>

<pallas_src>
import functools

import jax
import jax.numpy as jnp
from jax.experimental import pallas as pl
from jax.experimental.pallas import tpu as pltpu

_BYTES_CAP = 4 * 1024 * 1024  # ~4 MiB/block: measured HBM-roofline sweet spot.


def _round_down(x: int, m: int) -> int:
    return (x // m) * m


def _choose_tiles(B: int, N: int, M: int, passband: int, itemsize: int):
    # ---- lane tile (last dim): prefer full-M rows (contiguous bursts,
    # unmasked stores); otherwise the largest 128-multiple dividing M that
    # keeps an 8-row slab under the byte cap.
    if M < 128 or M * 8 * itemsize <= _BYTES_CAP:
        mt = M
    else:
        max_mt = max(128, _round_down(_BYTES_CAP // (8 * itemsize), 128))
        mt = 0
        if M % 128 == 0:
            for cand in range(max_mt, 127, -128):
                if M % cand == 0:
                    mt = cand
                    break
        if mt == 0:
            # M not 128-aligned and too large for full rows: ragged lane edge
            # (masked stores on the last block only).  Rare shapes.
            mt = min(max_mt, _round_down(M, 128))

    # ---- filtered-axis tile: multiple-of-8 divisor of N, chosen so (a) block
    # bytes stay under the cap and (b) when there is a stopband, at least one
    # block lies entirely past the passband (its HBM read is skipped).
    cap_tn = max(8, _round_down(_BYTES_CAP // (mt * itemsize), 8))
    cutoff = N - passband
    if N <= 8:
        tn = N
    elif N % 8 == 0:
        divisors = [d for d in range(8, N + 1, 8) if N % d == 0 and d <= cap_tn]
        tn = max(divisors)
        if cutoff > 0:
            for d in sorted(divisors, reverse=True):
                n_blocks = N // d
                read_blocks = -(-passband // d)
                if n_blocks - read_blocks >= 1:  # at least one skippable block
                    tn = d
                    break
    else:
        # N not sublane-aligned: full dim if it fits the cap, else 8-multiples
        # with a masked ragged tail (correct; unusual shapes).
        tn = N if N * mt * itemsize <= _BYTES_CAP else min(cap_tn, _round_down(N, 8))

    # ---- batch tile: fill the remaining byte budget (dtype-agnostic).
    tb = max(1, min(B, _BYTES_CAP // max(tn * mt * itemsize, 1)))
    return tb, tn, mt


def _lowpass_kernel(x_ref, o_ref, *, n_full: int, rel: int):
    """One (tb, tn, mt) block of o = filter * x.

    n_full: number of N-blocks entirely inside the passband.
    rel   : passband rows inside the straddle block (0 -> no straddle block).
    Grid axis 2 walks the N-blocks; blocks past the passband only store zeros
    (their input block index is clamped in the BlockSpec, so nothing new is
    fetched from HBM for them).
    """
    n = pl.program_id(2)

    @pl.when(n < n_full)
    def _copy():
        o_ref[...] = x_ref[...]

    if rel > 0:
        @pl.when(n == n_full)
        def _straddle():
            if rel % 8 == 0:
                # Sublane-aligned boundary: two static slab stores, no iota.
                bb, bn, bm = o_ref.shape
                o_ref[:, :rel, :] = x_ref[:, :rel, :]
                o_ref[:, rel:, :] = jnp.zeros((bb, bn - rel, bm), o_ref.dtype)
            else:
                row = jax.lax.broadcasted_iota(jnp.int32, o_ref.shape, 1)
                x = x_ref[...]
                o_ref[...] = jnp.where(row < rel, x, jnp.zeros_like(x))

    stop_cond = (n > n_full) if rel > 0 else (n >= n_full)

    @pl.when(stop_cond)
    def _zeros():
        o_ref[...] = jnp.zeros_like(o_ref)


def ideal_lowpass_filter(x: jax.Array, size: int, cutoff_count: int,
                         *, num_tensorcores: int = 1) -> jax.Array:
    """filter.unsqueeze(0).T * x with filter = [1]*(size-cutoff) + [0]*cutoff.

    x: (B, N, M) with N == size.  Pass num_tensorcores=2 on v7x-class chips so
    the batch axis is split when no other parallel grid axis has >=2 tiles
    (single-TC v5e/v6e should keep the default: the split only adds grid-step
    overhead there).
    """
    if cutoff_count >= size or cutoff_count < 0:
        raise ValueError("Cutoff count, C, must 0 <= C < N for size N.")
    if x.ndim != 3 or x.shape[1] != size:
        raise ValueError("x must be (batch, size, M) with dim 1 == `size`.")
    B, N, M = x.shape
    passband = size - cutoff_count
    itemsize = jnp.dtype(x.dtype).itemsize

    tb, tn, mt = _choose_tiles(B, N, M, passband, itemsize)

    b_blocks = pl.cdiv(B, tb)
    m_blocks = pl.cdiv(M, mt)
    n_blocks = pl.cdiv(N, tn)

    # v7x-only: make sure the 2-TC chip has >=2 parallel tiles to shard.
    if num_tensorcores >= 2 and B >= 2 and b_blocks < 2 and m_blocks < 2:
        tb = pl.cdiv(B, 2)
        b_blocks = pl.cdiv(B, tb)

    n_full = passband // tn                     # blocks fully inside passband
    rel = passband - n_full * tn                # passband rows in straddle block
    last_read_block = -(-passband // tn) - 1    # last N-block that must be read

    kernel = functools.partial(_lowpass_kernel, n_full=n_full, rel=rel)

    block_bytes = tb * tn * mt * itemsize
    # 2x double-buffered input + 2x output blocks, plus margin for internal scratch.
    vmem_limit = max(4 * block_bytes + (4 << 20), 20 << 20)

    return pl.pallas_call(
        kernel,
        out_shape=jax.ShapeDtypeStruct((B, N, M), x.dtype),
        grid_spec=pltpu.PrefetchScalarGridSpec(
            num_scalar_prefetch=0,
            grid=(b_blocks, m_blocks, n_blocks),
            # Input N-block index is clamped to the last passband block: with
            # the N axis innermost, stopband steps keep the same block index,
            # so their (unused) input block is never re-fetched from HBM.
            in_specs=[pl.BlockSpec(
                (tb, tn, mt),
                lambda b, m, n: (b, jnp.minimum(n, last_read_block), m))],
            out_specs=pl.BlockSpec((tb, tn, mt), lambda b, m, n: (b, n, m)),
        ),
        compiler_params=pltpu.CompilerParams(
            dimension_semantics=("parallel", "parallel", "arbitrary"),
            vmem_limit_bytes=int(vmem_limit),
        ),
    )(x)


def _reference(x: jax.Array, size: int, cutoff_count: int) -> jax.Array:
    filt = jnp.concatenate(
        [jnp.ones((size - cutoff_count,), dtype=x.dtype),
         jnp.zeros((cutoff_count,), dtype=x.dtype)])
    return filt[:, None] * x  # (N,1) * (B,N,M)


if __name__ == "__main__":
    key = jax.random.PRNGKey(0)
    configs = [
        # (B, size, cutoff, M)
        (2, 16, 4, 128),    # straddle-mask path (boundary not block-separable)
        (2, 32, 16, 128),   # clean pass/stop split: stopband block never read
        (2, 64, 24, 128),   # 8-aligned straddle (slab stores) + skipped block
    ]
    for (B, size, cutoff, M) in configs:
        key, sub = jax.random.split(key)
        x = jax.random.normal(sub, (B, size, M), dtype=jnp.float32)
        out = jax.block_until_ready(ideal_lowpass_filter(x, size, cutoff))
        ref = _reference(x, size, cutoff)
        assert out.shape == ref.shape and out.dtype == ref.dtype
        assert jnp.allclose(out, ref), f"mismatch for config {(B, size, cutoff, M)}"
    print("KERNEL_OK")
</pallas_src>

<mosaic_0001>
module attributes {stable_mosaic.version = 11 : i64} {
  func.func @_lowpass_kernel(%arg0: i32, %arg1: i32, %arg2: i32, %arg3: memref<2x16x128xf32, #tpu.memory_space<vmem>>, %arg4: memref<2x16x128xf32, #tpu.memory_space<vmem>>) attributes {dimension_semantics = [#tpu.dimension_semantics<parallel>, #tpu.dimension_semantics<parallel>, #tpu.dimension_semantics<arbitrary>], iteration_bounds = array<i64: 1, 1, 1>, scalar_prefetch = 0 : i64, scratch_operands = 0 : i64, tpu.core_type = #tpu.core_type<tc>, window_params = [{transform_indices = @transform_0, window_bounds = array<i64: 2, 16, 128>}, {transform_indices = @transform_1, window_bounds = array<i64: 2, 16, 128>}]} {
    %c0_i32 = arith.constant 0 : i32
    %0 = arith.cmpi slt, %arg2, %c0_i32 : i32
    %1 = arith.extui %0 : i1 to i32
    %c0_i32_0 = arith.constant 0 : i32
    %2 = arith.cmpi ne, %1, %c0_i32_0 : i32
    scf.if %2 {
      %c0 = arith.constant 0 : index
      %c0_5 = arith.constant 0 : index
      %c0_6 = arith.constant 0 : index
      %9 = vector.load %arg3[%c0, %c0_5, %c0_6] : memref<2x16x128xf32, #tpu.memory_space<vmem>>, vector<2x16x128xf32>
      %c0_7 = arith.constant 0 : index
      %c0_8 = arith.constant 0 : index
      %c0_9 = arith.constant 0 : index
      %10 = vector.load %arg4[%c0_7, %c0_8, %c0_9] : memref<2x16x128xf32, #tpu.memory_space<vmem>>, vector<2x16x128xf32>
      tpu.vector_store %arg4[%c0_7, %c0_8, %c0_9], %9 {strides = array<i32>} : memref<2x16x128xf32, #tpu.memory_space<vmem>>, vector<2x16x128xf32>,
    } else {
    }
    %c0_i32_1 = arith.constant 0 : i32
    %3 = arith.cmpi eq, %arg2, %c0_i32_1 : i32
    %4 = arith.extui %3 : i1 to i32
    %c0_i32_2 = arith.constant 0 : i32
    %5 = arith.cmpi ne, %4, %c0_i32_2 : i32
    scf.if %5 {
      %9 = tpu.iota {dimensions = array<i32: 1>} : vector<2x16x128xi32>
      %c0 = arith.constant 0 : index
      %c0_5 = arith.constant 0 : index
      %c0_6 = arith.constant 0 : index
      %10 = vector.load %arg3[%c0, %c0_5, %c0_6] : memref<2x16x128xf32, #tpu.memory_space<vmem>>, vector<2x16x128xf32>
      %c12_i32 = arith.constant 12 : i32
      %11 = vector.broadcast %c12_i32 : i32 to vector<2x16x128xi32>
      %12 = arith.cmpi slt, %9, %11 : vector<2x16x128xi32>
      %cst = arith.constant 0.000000e+00 : f32
      %13 = vector.broadcast %cst : f32 to vector<2x16x128xf32>
      %14 = arith.select %12, %10, %13 : vector<2x16x128xi1>, vector<2x16x128xf32>
      %c0_7 = arith.constant 0 : index
      %c0_8 = arith.constant 0 : index
      %c0_9 = arith.constant 0 : index
      %15 = vector.load %arg4[%c0_7, %c0_8, %c0_9] : memref<2x16x128xf32, #tpu.memory_space<vmem>>, vector<2x16x128xf32>
      tpu.vector_store %arg4[%c0_7, %c0_8, %c0_9], %14 {strides = array<i32>} : memref<2x16x128xf32, #tpu.memory_space<vmem>>, vector<2x16x128xf32>,
    } else {
    }
    %c0_i32_3 = arith.constant 0 : i32
    %6 = arith.cmpi sgt, %arg2, %c0_i32_3 : i32
    %7 = arith.extui %6 : i1 to i32
    %c0_i32_4 = arith.constant 0 : i32
    %8 = arith.cmpi ne, %7, %c0_i32_4 : i32
    scf.if %8 {
      %cst = arith.constant 0.000000e+00 : f32
      %9 = vector.broadcast %cst : f32 to vector<2x16x128xf32>
      %c0 = arith.constant 0 : index
      %c0_5 = arith.constant 0 : index
      %c0_6 = arith.constant 0 : index
      %10 = vector.load %arg4[%c0, %c0_5, %c0_6] : memref<2x16x128xf32, #tpu.memory_space<vmem>>, vector<2x16x128xf32>
      tpu.vector_store %arg4[%c0, %c0_5, %c0_6], %9 {strides = array<i32>} : memref<2x16x128xf32, #tpu.memory_space<vmem>>, vector<2x16x128xf32>,
    } else {
    }
    return
  }
  func.func @transform_0(%arg0: i32, %arg1: i32, %arg2: i32) -> (i32, i32, i32) {
    %c0_i32 = arith.constant 0 : i32
    %0 = arith.minsi %arg2, %c0_i32 : i32
    %c0_i32_0 = arith.constant 0 : i32
    return %arg0, %0, %arg1 : i32, i32, i32
  }
  func.func @transform_1(%arg0: i32, %arg1: i32, %arg2: i32) -> (i32, i32, i32) {
    %c0_i32 = arith.constant 0 : i32
    return %arg0, %arg2, %arg1 : i32, i32, i32
  }
}

</mosaic_0001>

<llo_original>
// kernel: tpu_custom_call.1
$region0: #{tpu_custom_call.1}
  #allocation0 [shape = 'u32[]', space=smem, size = 0x4, offset = 0x4, fixed_abs, tag = 'smem constant byte address 0x4 - core index']
  #allocation1 [shape = 'u32[144,128]{1,0:T(1,128)}', space=vmem, size = 0x12000, scoped, tag = 'internal scratch']
  %s0 = inlined_call_operand.hbm [shape: f32[2,16,128], index: 0, kind: input, shape index: {}]
  %s1 = inlined_call_operand.hbm [shape: f32[2,16,128], index: 1, kind: output, shape index: {}]
  %s2 = sld [smem:[#allocation0]]
  $region30: #{tpu_custom_call.1} parent=0
    _
  %s4 = ssub.s32 1, %s2
  %s5 = scalar_select 0, %s4, %s2
  $region1: #{tpu_custom_call.1} parent=0
    #allocation2 [shape = 'u8[16384]{0}', space=vmem, size = 0x4000, scoped, tag = 'input window, operand 0, single buffered']
    #allocation3 [shape = 's32[1]{0}', space=sflag, size = 0x4, scoped, tag = 'scoped memory for tpu_custom_call.1']
    #allocation4 [shape = 's32[1]{0}', space=sflag, size = 0x4, scoped, tag = 'scoped memory for tpu_custom_call.1']
    #allocation5 [shape = 'u8[16384]{0}', space=vmem, size = 0x4000, scoped, tag = 'output window, operand 0, single buffered']
    %6 = vsyncpa [#allocation3], 0
    %7 = vsyncpa [#allocation4], 0
    // Predicated region
    $region2: #{tpu_custom_call.1} parent=1 // pred_check
      _
    $region3: #{tpu_custom_call.1} parent=1 // pred_check_branch
      %9 = sbr.rel (0) target = $region5
    $region4: #{tpu_custom_call.1} parent=1 // pred_region
      %s11 = ssub.s32 512, 512
      %12 = vsyncadd [#allocation3], %s11
      %s13 = sshll.u32 [#allocation2], 4
      %s14 = int_to_ptr.vmem [resolvable:$true] %s13
      %19 = dma.hbm_to_vmem [thread:$0]  %s0, 512, %s14, [#allocation3], 128, 128, 8
    $region5: #{tpu_custom_call.1} parent=1 // pred_fallthru
      _
    // Predicated region
    $region6: #{tpu_custom_call.1} parent=1 // pred_check
      _
    $region7: #{tpu_custom_call.1} parent=1 // pred_check_branch
      %21 = sbr.rel (0) target = $region9
    $region8: #{tpu_custom_call.1} parent=1 // pred_region
      %22 = dma.done [#allocation3], 512
    $region9: #{tpu_custom_call.1} parent=1 // pred_fallthru
      _
    %p23 = scmp.lt.s32.totalorder 0, 0
    // Predicated region
    $region10: #{tpu_custom_call.1} parent=1 // pred_check
      %p24 = pneg %p23
    $region11: #{tpu_custom_call.1} parent=1 // pred_check_branch
      %26 = sbr.rel (%p24) target = $region13
    $region12: #{tpu_custom_call.1} parent=1 // pred_region
      %v27 = vld [vmem:[#allocation2] sm:$0xff]
      %v28 = vld [vmem:[#allocation2 + $0x8] sm:$0xff]
      %v29 = vld [vmem:[#allocation2 + $0x10] sm:$0xff]
      %v30 = vld [vmem:[#allocation2 + $0x18] sm:$0xff]
      %31 = vst [vmem:[#allocation5] sm:$0xff] %v27
      %32 = vst [vmem:[#allocation5 + $0x8] sm:$0xff] %v28
      %33 = vst [vmem:[#allocation5 + $0x10] sm:$0xff] %v29
      %34 = vst [vmem:[#allocation5 + $0x18] sm:$0xff] %v30
    $region13: #{tpu_custom_call.1} parent=1 // pred_fallthru
      _
    %p35 = scmp.eq.s32.totalorder 0, 0
    // Predicated region
    $region14: #{tpu_custom_call.1} parent=1 // pred_check
      %p36 = pneg %p35
    $region15: #{tpu_custom_call.1} parent=1 // pred_check_branch
      %38 = sbr.rel (%p36) target = $region17
    $region16: #{tpu_custom_call.1} parent=1 // pred_region
      %v39 = vlaneseq
      %v40 = vshrl.u32 %v39, 7
      %v41 = vadd.s32 %v40, 8
      %v42 = vld [vmem:[#allocation2] sm:$0xff]
      %v43 = vld [vmem:[#allocation2 + $0x8] sm:$0xff]
      %v44 = vld [vmem:[#allocation2 + $0x10] sm:$0xff]
      %v45 = vld [vmem:[#allocation2 + $0x18] sm:$0xff]
      %vm46 = vcmp.lt.s32.totalorder %v40, 12
      %vm47 = vcmp.lt.s32.totalorder %v41, 12
      %v48 = vsel %vm46, %v42, 0.0
      %v49 = vsel %vm47, %v43, 0.0
      %v50 = vsel %vm46, %v44, 0.0
      %v51 = vsel %vm47, %v45, 0.0
      %52 = vst [vmem:[#allocation5] sm:$0xff] %v48
      %53 = vst [vmem:[#allocation5 + $0x8] sm:$0xff] %v49
      %54 = vst [vmem:[#allocation5 + $0x10] sm:$0xff] %v50
      %55 = vst [vmem:[#allocation5 + $0x18] sm:$0xff] %v51
    $region17: #{tpu_custom_call.1} parent=1 // pred_fallthru
      _
    %p56 = scmp.gt.s32.totalorder 0, 0
    // Predicated region
    $region18: #{tpu_custom_call.1} parent=1 // pred_check
      %p57 = pneg %p56
    $region19: #{tpu_custom_call.1} parent=1 // pred_check_branch
      %59 = sbr.rel (%p57) target = $region21
    $region20: #{tpu_custom_call.1} parent=1 // pred_region
      %60 = vst [vmem:[#allocation5] sm:$0xff] 0.0
      %61 = vst [vmem:[#allocation5 + $0x8] sm:$0xff] 0.0
      %62 = vst [vmem:[#allocation5 + $0x10] sm:$0xff] 0.0
      %63 = vst [vmem:[#allocation5 + $0x18] sm:$0xff] 0.0
    $region21: #{tpu_custom_call.1} parent=1 // pred_fallthru
      _
    // Predicated region
    $region22: #{tpu_custom_call.1} parent=1 // pred_check
      _
    $region23: #{tpu_custom_call.1} parent=1 // pred_check_branch
      %65 = sbr.rel (0) target = $region25
    $region24: #{tpu_custom_call.1} parent=1 // pred_region
      %s67 = ssub.s32 512, 512
      %68 = vsyncadd [#allocation4], %s67
      %s69 = sshll.u32 [#allocation5], 4
      %s70 = int_to_ptr.vmem [resolvable:$true] %s69
      %75 = dma.vmem_to_hbm [thread:$0]  %s70, 512, %s1, [#allocation4], 128, 128, 8
    $region25: #{tpu_custom_call.1} parent=1 // pred_fallthru
      _
    // Predicated region
    $region26: #{tpu_custom_call.1} parent=1 // pred_check
      _
    $region27: #{tpu_custom_call.1} parent=1 // pred_check_branch
      %77 = sbr.rel (0) target = $region29
    $region28: #{tpu_custom_call.1} parent=1 // pred_region
      %78 = dma.done [#allocation4], 512
    $region29: #{tpu_custom_call.1} parent=1 // pred_fallthru
      _
    %79 = vsyncpa [#allocation3], 1
    %80 = vsyncpa [#allocation4], 1

</llo_original>
